<compile_context>
chip_gen: v7x
topology: tpu7x:2x2x1
jax: 0.10.0
libtpu: 0.0.40
codegen_flags: <defaults>
</compile_context>

<pallas_src>
import functools

import jax
import jax.numpy as jnp
from jax.experimental import pallas as pl
from jax.experimental.pallas import tpu as pltpu


def _round_up(x, m):
    return ((x + m - 1) // m) * m


def _mlp_kernel(x_ref, w1_ref, b1_ref, w2_ref, b2_ref, w3_ref, b3_ref, o_ref):
    # layer1: Linear + ReLU  (f32 accumulation on the MXU, f32 elementwise)
    h1 = jnp.dot(x_ref[...], w1_ref[...], preferred_element_type=jnp.float32)
    h1 = jnp.maximum(h1 + b1_ref[...], 0.0)
    # layer2: Linear + ReLU  (cast to MXU input dtype only at the matmul)
    h2 = jnp.dot(h1.astype(w2_ref.dtype), w2_ref[...],
                 preferred_element_type=jnp.float32)
    h2 = jnp.maximum(h2 + b2_ref[...], 0.0)
    # layer3: Linear (no activation)
    out = jnp.dot(h2.astype(w3_ref.dtype), w3_ref[...],
                  preferred_element_type=jnp.float32)
    o_ref[...] = (out + b3_ref[...]).astype(o_ref.dtype)


@functools.partial(jax.jit, static_argnames=("tm", "mxu_dtype"))
def activation_net_forward(x, params, *, tm=128, mxu_dtype=None):
    """x: (B, in_dim); params: dict of w1,b1,w2,b2,w3,b3 (weights (in, out))."""
    w1, b1, w2, b2, w3, b3 = (params[k] for k in ("w1", "b1", "w2", "b2", "w3", "b3"))

    B, in_dim = x.shape
    h1_dim = w1.shape[1]
    h2_dim = w2.shape[1]
    out_dim = w3.shape[1]
    out_dtype = x.dtype

    # Optional low-precision MXU inputs (f32 accumulation preserved in-kernel).
    if mxu_dtype is not None:
        x = x.astype(mxu_dtype)
        w1 = w1.astype(mxu_dtype)
        w2 = w2.astype(mxu_dtype)
        w3 = w3.astype(mxu_dtype)

    # Batch tile: multiple of 8 (sublane), clamped to the (padded) batch.
    tm_eff = min(_round_up(tm, 8), _round_up(B, 8))
    b_pad = _round_up(B, tm_eff)
    if b_pad != B:
        x = jnp.pad(x, ((0, b_pad - B), (0, 0)))
    grid = (b_pad // tm_eff,)

    # Advisory cost estimate for XLA's scheduler.
    flops = 2 * B * (in_dim * h1_dim + h1_dim * h2_dim + h2_dim * out_dim)
    bytes_accessed = (
        x.size * x.dtype.itemsize
        + sum(a.size * a.dtype.itemsize for a in (w1, b1, w2, b2, w3, b3))
        + B * out_dim * jnp.dtype(out_dtype).itemsize
    )
    cost = pl.CostEstimate(flops=flops, transcendentals=0,
                           bytes_accessed=bytes_accessed)

    resident = lambda shape: pl.BlockSpec(shape, lambda i: (0, 0))

    out = pl.pallas_call(
        _mlp_kernel,
        out_shape=jax.ShapeDtypeStruct((b_pad, out_dim), out_dtype),
        grid_spec=pltpu.PrefetchScalarGridSpec(
            num_scalar_prefetch=0,
            grid=grid,
            in_specs=[
                pl.BlockSpec((tm_eff, in_dim), lambda i: (i, 0)),  # x tile
                resident(w1.shape), resident(b1.shape),            # layer1
                resident(w2.shape), resident(b2.shape),            # layer2
                resident(w3.shape), resident(b3.shape),            # layer3
            ],
            out_specs=pl.BlockSpec((tm_eff, out_dim), lambda i: (i, 0)),
        ),
        compiler_params=pltpu.CompilerParams(
            dimension_semantics=("parallel",),   # shards batch tiles over v7x's 2 TCs
        ),
        cost_estimate=cost,
    )(x, w1, b1, w2, b2, w3, b3)

    return out[:B] if b_pad != B else out


def init_params(key, in_dim, n_hidden_1, n_hidden_2, out_dim, dtype=jnp.float32):
    ks = jax.random.split(key, 6)

    def lin(kw, kb, fan_in, fan_out):
        # roughly matches nn.Linear's uniform(-1/sqrt(fan_in), 1/sqrt(fan_in))
        bound = 1.0 / jnp.sqrt(jnp.asarray(fan_in, dtype))
        w = jax.random.uniform(kw, (fan_in, fan_out), dtype, -bound, bound)
        b = jax.random.uniform(kb, (1, fan_out), dtype, -bound, bound)
        return w, b

    w1, b1 = lin(ks[0], ks[1], in_dim, n_hidden_1)
    w2, b2 = lin(ks[2], ks[3], n_hidden_1, n_hidden_2)
    w3, b3 = lin(ks[4], ks[5], n_hidden_2, out_dim)
    return {"w1": w1, "b1": b1, "w2": w2, "b2": b2, "w3": w3, "b3": b3}


if __name__ == "__main__":
    # NOTE: at this size the kernel is pure per-call overhead; the grid /
    # resident-weight structure only pays off when batch (and hidden dims)
    # are scaled up. Semantics are identical at any size.
    in_dim, n_hidden_1, n_hidden_2, out_dim = 32, 64, 64, 16
    batch = 8

    key = jax.random.PRNGKey(0)
    kx, kp = jax.random.split(key)
    x = jax.random.normal(kx, (batch, in_dim), dtype=jnp.float32)
    params = init_params(kp, in_dim, n_hidden_1, n_hidden_2, out_dim)

    out = activation_net_forward(x, params)          # f32 MXU path (exact check)
    out = jax.block_until_ready(out)

    # reference check in plain JAX
    ref = jnp.maximum(x @ params["w1"] + params["b1"], 0.0)
    ref = jnp.maximum(ref @ params["w2"] + params["b2"], 0.0)
    ref = ref @ params["w3"] + params["b3"]
    assert out.shape == (batch, out_dim)
    assert jnp.allclose(out, ref, atol=1e-5, rtol=1e-5)

    # also exercise the bf16-MXU / f32-accumulate path used at scale
    out_bf16 = jax.block_until_ready(
        activation_net_forward(x, params, mxu_dtype=jnp.bfloat16))
    assert jnp.allclose(out_bf16, ref, atol=5e-2, rtol=5e-2)

    print("KERNEL_OK")
</pallas_src>

<mosaic_0001>
module attributes {stable_mosaic.version = 11 : i64} {
  func.func @_mlp_kernel(%arg0: i32, %arg1: memref<8x32xf32, #tpu.memory_space<vmem>>, %arg2: memref<32x64xf32, #tpu.memory_space<vmem>>, %arg3: memref<1x64xf32, #tpu.memory_space<vmem>>, %arg4: memref<64x64xf32, #tpu.memory_space<vmem>>, %arg5: memref<1x64xf32, #tpu.memory_space<vmem>>, %arg6: memref<64x16xf32, #tpu.memory_space<vmem>>, %arg7: memref<1x16xf32, #tpu.memory_space<vmem>>, %arg8: memref<8x16xf32, #tpu.memory_space<vmem>>) attributes {dimension_semantics = [#tpu.dimension_semantics<parallel>], iteration_bounds = array<i64: 1>, scalar_prefetch = 0 : i64, scratch_operands = 0 : i64, tpu.core_type = #tpu.core_type<tc>, window_params = [{transform_indices = @transform_0, window_bounds = array<i64: 8, 32>}, {pipeline_mode = #tpu.pipeline_mode<synchronous>, transform_indices = @transform_1, window_bounds = array<i64: 32, 64>}, {pipeline_mode = #tpu.pipeline_mode<synchronous>, transform_indices = @transform_2, window_bounds = array<i64: 1, 64>}, {pipeline_mode = #tpu.pipeline_mode<synchronous>, transform_indices = @transform_3, window_bounds = array<i64: 64, 64>}, {pipeline_mode = #tpu.pipeline_mode<synchronous>, transform_indices = @transform_4, window_bounds = array<i64: 1, 64>}, {pipeline_mode = #tpu.pipeline_mode<synchronous>, transform_indices = @transform_5, window_bounds = array<i64: 64, 16>}, {pipeline_mode = #tpu.pipeline_mode<synchronous>, transform_indices = @transform_6, window_bounds = array<i64: 1, 16>}, {transform_indices = @transform_7, window_bounds = array<i64: 8, 16>}]} {
    %c0 = arith.constant 0 : index
    %c0_0 = arith.constant 0 : index
    %0 = vector.load %arg1[%c0, %c0_0] : memref<8x32xf32, #tpu.memory_space<vmem>>, vector<8x32xf32>
    %c0_1 = arith.constant 0 : index
    %c0_2 = arith.constant 0 : index
    %1 = vector.load %arg2[%c0_1, %c0_2] : memref<32x64xf32, #tpu.memory_space<vmem>>, vector<32x64xf32>
    %cst = arith.constant dense<0.000000e+00> : vector<8x64xf32>
    %2 = tpu.matmul %0, %1, %cst {dimension_numbers = #tpu.dot_dimension_numbers<[1], [0], [0], [1], [0, 0, 1, 1], [], []>} : vector<8x32xf32>, vector<32x64xf32>, vector<8x64xf32> -> vector<8x64xf32>
    %c0_3 = arith.constant 0 : index
    %c0_4 = arith.constant 0 : index
    %3 = vector.load %arg3[%c0_3, %c0_4] : memref<1x64xf32, #tpu.memory_space<vmem>>, vector<1x64xf32>
    %4 = vector.broadcast %3 : vector<1x64xf32> to vector<8x64xf32>
    %5 = arith.addf %2, %4 : vector<8x64xf32>
    %cst_5 = arith.constant 0.000000e+00 : f32
    %6 = vector.broadcast %cst_5 : f32 to vector<8x64xf32>
    %7 = arith.maximumf %5, %6 : vector<8x64xf32>
    %c0_6 = arith.constant 0 : index
    %c0_7 = arith.constant 0 : index
    %8 = vector.load %arg4[%c0_6, %c0_7] : memref<64x64xf32, #tpu.memory_space<vmem>>, vector<64x64xf32>
    %cst_8 = arith.constant dense<0.000000e+00> : vector<8x64xf32>
    %9 = tpu.matmul %7, %8, %cst_8 {dimension_numbers = #tpu.dot_dimension_numbers<[1], [0], [0], [1], [0, 0, 1, 1], [], []>} : vector<8x64xf32>, vector<64x64xf32>, vector<8x64xf32> -> vector<8x64xf32>
    %c0_9 = arith.constant 0 : index
    %c0_10 = arith.constant 0 : index
    %10 = vector.load %arg5[%c0_9, %c0_10] : memref<1x64xf32, #tpu.memory_space<vmem>>, vector<1x64xf32>
    %11 = vector.broadcast %10 : vector<1x64xf32> to vector<8x64xf32>
    %12 = arith.addf %9, %11 : vector<8x64xf32>
    %cst_11 = arith.constant 0.000000e+00 : f32
    %13 = vector.broadcast %cst_11 : f32 to vector<8x64xf32>
    %14 = arith.maximumf %12, %13 : vector<8x64xf32>
    %c0_12 = arith.constant 0 : index
    %c0_13 = arith.constant 0 : index
    %15 = vector.load %arg6[%c0_12, %c0_13] : memref<64x16xf32, #tpu.memory_space<vmem>>, vector<64x16xf32>
    %cst_14 = arith.constant dense<0.000000e+00> : vector<8x16xf32>
    %16 = tpu.matmul %14, %15, %cst_14 {dimension_numbers = #tpu.dot_dimension_numbers<[1], [0], [0], [1], [0, 0, 1, 1], [], []>} : vector<8x64xf32>, vector<64x16xf32>, vector<8x16xf32> -> vector<8x16xf32>
    %c0_15 = arith.constant 0 : index
    %c0_16 = arith.constant 0 : index
    %17 = vector.load %arg7[%c0_15, %c0_16] : memref<1x16xf32, #tpu.memory_space<vmem>>, vector<1x16xf32>
    %18 = vector.broadcast %17 : vector<1x16xf32> to vector<8x16xf32>
    %19 = arith.addf %16, %18 : vector<8x16xf32>
    %c0_17 = arith.constant 0 : index
    %c0_18 = arith.constant 0 : index
    %20 = vector.load %arg8[%c0_17, %c0_18] : memref<8x16xf32, #tpu.memory_space<vmem>>, vector<8x16xf32>
    tpu.vector_store %arg8[%c0_17, %c0_18], %19 {strides = array<i32>} : memref<8x16xf32, #tpu.memory_space<vmem>>, vector<8x16xf32>,
    return
  }
  func.func @transform_0(%arg0: i32) -> (i32, i32) {
    %c0_i32 = arith.constant 0 : i32
    %c0_i32_0 = arith.constant 0 : i32
    return %arg0, %c0_i32 : i32, i32
  }
  func.func @transform_1(%arg0: i32) -> (i32, i32) {
    %c0_i32 = arith.constant 0 : i32
    %c0_i32_0 = arith.constant 0 : i32
    %c0_i32_1 = arith.constant 0 : i32
    return %c0_i32, %c0_i32_0 : i32, i32
  }
  func.func @transform_2(%arg0: i32) -> (i32, i32) {
    %c0_i32 = arith.constant 0 : i32
    %c0_i32_0 = arith.constant 0 : i32
    %c0_i32_1 = arith.constant 0 : i32
    return %c0_i32, %c0_i32_0 : i32, i32
  }
  func.func @transform_3(%arg0: i32) -> (i32, i32) {
    %c0_i32 = arith.constant 0 : i32
    %c0_i32_0 = arith.constant 0 : i32
    %c0_i32_1 = arith.constant 0 : i32
    return %c0_i32, %c0_i32_0 : i32, i32
  }
  func.func @transform_4(%arg0: i32) -> (i32, i32) {
    %c0_i32 = arith.constant 0 : i32
    %c0_i32_0 = arith.constant 0 : i32
    %c0_i32_1 = arith.constant 0 : i32
    return %c0_i32, %c0_i32_0 : i32, i32
  }
  func.func @transform_5(%arg0: i32) -> (i32, i32) {
    %c0_i32 = arith.constant 0 : i32
    %c0_i32_0 = arith.constant 0 : i32
    %c0_i32_1 = arith.constant 0 : i32
    return %c0_i32, %c0_i32_0 : i32, i32
  }
  func.func @transform_6(%arg0: i32) -> (i32, i32) {
    %c0_i32 = arith.constant 0 : i32
    %c0_i32_0 = arith.constant 0 : i32
    %c0_i32_1 = arith.constant 0 : i32
    return %c0_i32, %c0_i32_0 : i32, i32
  }
  func.func @transform_7(%arg0: i32) -> (i32, i32) {
    %c0_i32 = arith.constant 0 : i32
    %c0_i32_0 = arith.constant 0 : i32
    return %arg0, %c0_i32 : i32, i32
  }
}

</mosaic_0001>

<llo_original>
// kernel: activation_net_forward.1
$region0: #{activation_net_forward.1}
  #allocation0 [shape = 'u32[]', space=smem, size = 0x4, offset = 0x4, fixed_abs, tag = 'smem constant byte address 0x4 - core index']
  #allocation1 [shape = 'u32[144,128]{1,0:T(1,128)}', space=vmem, size = 0x12000, scoped, tag = 'internal scratch']
  %s0 = inlined_call_operand.hbm [shape: f32[8,32], index: 0, kind: input, shape index: {}]
  %s1 = inlined_call_operand.vmem [shape: f32[32,64], index: 1, kind: input, shape index: {}]
  %s2 = inlined_call_operand.vmem [shape: f32[1,64], index: 2, kind: input, shape index: {}]
  %s3 = inlined_call_operand.vmem [shape: f32[64,64], index: 3, kind: input, shape index: {}]
  %s4 = inlined_call_operand.vmem [shape: f32[1,64], index: 4, kind: input, shape index: {}]
  %s5 = inlined_call_operand.vmem [shape: f32[64,16], index: 5, kind: input, shape index: {}]
  %s6 = inlined_call_operand.hbm [shape: f32[1,16], index: 6, kind: input, shape index: {}]
  %s7 = inlined_call_operand.hbm [shape: f32[8,16], index: 7, kind: output, shape index: {}]
  %s8 = sld [smem:[#allocation0]]
  $region46: #{activation_net_forward.1} parent=0
    _
  %s10 = ssub.s32 1, %s8
  %s11 = scalar_select 0, %s10, %s8
  $region1: #{activation_net_forward.1} parent=0
    #allocation2 [shape = 'u8[4096]{0}', space=vmem, size = 0x1000, scoped, tag = 'input window, operand 0, single buffered']
    #allocation3 [shape = 's32[1]{0}', space=sflag, size = 0x4, scoped, tag = 'scoped memory for activation_net_forward.1']
    #allocation4 [shape = 's32[1]{0}', space=sflag, size = 0x4, scoped, tag = 'scoped memory for activation_net_forward.1']
    #allocation5 [shape = 'u8[512]{0}', space=vmem, size = 0x400, scoped, tag = 'input window, operand 6, single buffered']
    #allocation6 [shape = 's32[1]{0}', space=sflag, size = 0x4, scoped, tag = 'scoped memory for activation_net_forward.1']
    #allocation7 [shape = 'u8[4096]{0}', space=vmem, size = 0x1000, scoped, tag = 'output window, operand 0, single buffered']
    %12 = vsyncpa [#allocation3], 0
    %13 = vsyncpa [#allocation6], 0
    %14 = vsyncpa [#allocation4], 0
    // Predicated region
    $region2: #{activation_net_forward.1} parent=1 // pred_check
      _
    $region3: #{activation_net_forward.1} parent=1 // pred_check_branch
      %16 = sbr.rel (0) target = $region5
    $region4: #{activation_net_forward.1} parent=1 // pred_region
      %s18 = ssub.s32 128, 128
      %19 = vsyncadd [#allocation3], %s18
      %s21 = sshll.u32 [#allocation2], 4
      %s22 = int_to_ptr.vmem [resolvable:$true] %s21
      %24 = dma.hbm_to_vmem [thread:$0]  %s0, 128, %s22, [#allocation3]
    $region5: #{activation_net_forward.1} parent=1 // pred_fallthru
      _
    // Predicated region
    $region6: #{activation_net_forward.1} parent=1 // pred_check
      _
    $region7: #{activation_net_forward.1} parent=1 // pred_check_branch
      %26 = sbr.rel (0) target = $region9
    $region8: #{activation_net_forward.1} parent=1 // pred_region
      _
    $region9: #{activation_net_forward.1} parent=1 // pred_fallthru
      _
    // Predicated region
    $region10: #{activation_net_forward.1} parent=1 // pred_check
      _
    $region11: #{activation_net_forward.1} parent=1 // pred_check_branch
      %28 = sbr.rel (0) target = $region13
    $region12: #{activation_net_forward.1} parent=1 // pred_region
      _
    $region13: #{activation_net_forward.1} parent=1 // pred_fallthru
      _
    // Predicated region
    $region14: #{activation_net_forward.1} parent=1 // pred_check
      _
    $region15: #{activation_net_forward.1} parent=1 // pred_check_branch
      %30 = sbr.rel (0) target = $region17
    $region16: #{activation_net_forward.1} parent=1 // pred_region
      _
    $region17: #{activation_net_forward.1} parent=1 // pred_fallthru
      _
    // Predicated region
    $region18: #{activation_net_forward.1} parent=1 // pred_check
      _
    $region19: #{activation_net_forward.1} parent=1 // pred_check_branch
      %32 = sbr.rel (0) target = $region21
    $region20: #{activation_net_forward.1} parent=1 // pred_region
      _
    $region21: #{activation_net_forward.1} parent=1 // pred_fallthru
      _
    // Predicated region
    $region22: #{activation_net_forward.1} parent=1 // pred_check
      _
    $region23: #{activation_net_forward.1} parent=1 // pred_check_branch
      %34 = sbr.rel (0) target = $region25
    $region24: #{activation_net_forward.1} parent=1 // pred_region
      _
    $region25: #{activation_net_forward.1} parent=1 // pred_fallthru
      _
    // Predicated region
    $region26: #{activation_net_forward.1} parent=1 // pred_check
      _
    $region27: #{activation_net_forward.1} parent=1 // pred_check_branch
      %36 = sbr.rel (0) target = $region29
    $region28: #{activation_net_forward.1} parent=1 // pred_region
      %s38 = ssub.s32 16, 16
      %39 = vsyncadd [#allocation6], %s38
      %s41 = sshll.u32 [#allocation5], 4
      %s42 = int_to_ptr.vmem [resolvable:$true] %s41
      %44 = dma.hbm_to_vmem [thread:$0]  %s6, 16, %s42, [#allocation6]
    $region29: #{activation_net_forward.1} parent=1 // pred_fallthru
      _
    // Predicated region
    $region30: #{activation_net_forward.1} parent=1 // pred_check
      _
    $region31: #{activation_net_forward.1} parent=1 // pred_check_branch
      %46 = sbr.rel (0) target = $region33
    $region32: #{activation_net_forward.1} parent=1 // pred_region
      %47 = dma.done [#allocation3], 128
    $region33: #{activation_net_forward.1} parent=1 // pred_fallthru
      _
    // Predicated region
    $region34: #{activation_net_forward.1} parent=1 // pred_check
      _
    $region35: #{activation_net_forward.1} parent=1 // pred_check_branch
      %49 = sbr.rel (0) target = $region37
    $region36: #{activation_net_forward.1} parent=1 // pred_region
      %50 = dma.done [#allocation6], 16
    $region37: #{activation_net_forward.1} parent=1 // pred_fallthru
      _
    %v51 = vld [vmem:[#allocation2] sm:$0xff]
    %v52 = vld [vmem:[%s1] sm:$0xff]
    %v53 = vld [vmem:[%s1 + $0x8] sm:$0xff]
    %v54 = vld [vmem:[%s1 + $0x10] sm:$0xff]
    %v55 = vld [vmem:[%s1 + $0x18] sm:$0xff]
    %v56 = vld [vmem:[%s2] sm:$0x1]
    %v58 = vlaneseq
    %v59 = vshrl.u32 %v58, 7
    %v60 = vsub.s32 0, %v59
    %v61 = vrot.slane %v56, %v60
    %vm63 = vcmask 261120
    %v65 = vsel %vm63, %v51, 0
    %67 = vmatprep.subr.mxu0 0.0
    %68 = vmatpush1.msra.mxu0 %v52
    %69 = vmatprep.subr.mxu0 0.0
    %70 = vmatpush1.msra.mxu0 %v53
    %71 = vmatprep.subr.mxu0 0.0
    %72 = vmatpush1.msra.mxu0 %v54
    %73 = vmatprep.subr.mxu0 0.0
    %74 = vmatpush1.msra.mxu0 %v55
    %75 = vmatprep.subr.mxu0 0.0
    %76 = vmatpush1.msra.mxu0 0.0
    %77 = vmatprep.subr.mxu0 0.0
    %78 = vmatpush1.msra.mxu0 0.0
    %79 = vmatprep.subr.mxu0 0.0
    %80 = vmatpush1.msra.mxu0 0.0
    %81 = vmatprep.subr.mxu0 0.0
    %82 = vmatpush1.msra.mxu0 0.0
    %83 = vmatprep.subr.mxu0 0.0
    %84 = vmatpush1.msra.mxu0 0.0
    %85 = vmatprep.subr.mxu0 0.0
    %86 = vmatpush1.msra.mxu0 0.0
    %87 = vmatprep.subr.mxu0 0.0
    %88 = vmatpush1.msra.mxu0 0.0
    %89 = vmatprep.subr.mxu0 0.0
    %90 = vmatpush1.msra.mxu0 0.0
    %91 = vmatprep.subr.mxu0 0.0
    %92 = vmatpush1.msra.mxu0 0.0
    %93 = vmatprep.subr.mxu0 0.0
    %94 = vmatpush1.msra.mxu0 0.0
    %95 = vmatprep.subr.mxu0 0.0
    %96 = vmatpush1.msra.mxu0 0.0
    %97 = vmatprep.subr.mxu0 0.0
    %98 = vmatpush1.msra.mxu0 0.0
    %99 = vmatprep.subr.mxu0 0.0
    %100 = vmatpush1.msra.mxu0 0.0
    %101 = vmatprep.subr.mxu0 0.0
    %102 = vmatpush1.msra.mxu0 0.0
    %103 = vmatprep.subr.mxu0 0.0
    %104 = vmatpush1.msra.mxu0 0.0
    %105 = vmatprep.subr.mxu0 0.0
    %106 = vmatpush1.msra.mxu0 0.0
    %107 = vmatprep.subr.mxu0 0.0
    %108 = vmatpush1.msra.mxu0 0.0
    %109 = vmatprep.subr.mxu0 0.0
    %110 = vmatpush1.msra.mxu0 0.0
    %111 = vmatprep.subr.mxu0 0.0
    %112 = vmatpush1.msra.mxu0 0.0
    %113 = vmatprep.subr.mxu0 0.0
    %114 = vmatpush1.msra.mxu0 0.0
    %115 = vmatprep.subr.mxu0 0.0
    %116 = vmatpush1.msra.mxu0 0.0
    %117 = vmatprep.subr.mxu0 0.0
    %118 = vmatpush1.msra.mxu0 0.0
    %119 = vmatprep.subr.mxu0 0.0
    %120 = vmatpush1.msra.mxu0 0.0
    %121 = vmatprep.subr.mxu0 0.0
    %122 = vmatpush1.msra.mxu0 0.0
    %123 = vmatprep.subr.mxu0 0.0
    %124 = vmatpush1.msra.mxu0 0.0
    %125 = vmatprep.subr.mxu0 0.0
    %126 = vmatpush1.msra.mxu0 0.0
    %127 = vmatprep.subr.mxu0 0.0
    %128 = vmatpush1.msra.mxu0 0.0
    %129 = vmatprep.subr.mxu0 0.0
    %130 = vmatpush1.msra.mxu0 0.0
    %131 = vmatprep.mubr.f32.mxu0 0.0
    %132 = vmatmul.mubr.f32.gmra.mrb[0].mxu0 %v65
    %v133 = vpop.f32.mrb[0].mxu0
    %v134 = vadd.f32 %v61, %v133
    %v135 = vpop.f32.mrb[0].mxu0
    %136 = vdwg.mxu0
    %v137 = vmax.f32 %v134, 0.0
    %v138 = vld [vmem:[%s3] sm:$0xff]
    %v139 = vld [vmem:[%s3 + $0x8] sm:$0xff]
    %v140 = vld [vmem:[%s3 + $0x10] sm:$0xff]
    %v141 = vld [vmem:[%s3 + $0x18] sm:$0xff]
    %v142 = vld [vmem:[%s3 + $0x20] sm:$0xff]
    %v143 = vld [vmem:[%s3 + $0x28] sm:$0xff]
    %v144 = vld [vmem:[%s3 + $0x30] sm:$0xff]
    %v145 = vld [vmem:[%s3 + $0x38] sm:$0xff]
    %v146 = vld [vmem:[%s4] sm:$0x1]
    %v148 = vlaneseq
    %v149 = vshrl.u32 %v148, 7
    %v150 = vsub.s32 0, %v149
    %v151 = vrot.slane %v146, %v150
    %vm153 = vcmask 523264
    %v155 = vsel %vm153, %v137, 0
    %157 = vmatprep.subr.mxu0 0.0
    %158 = vmatpush1.msra.mxu0 %v138
    %159 = vmatprep.subr.mxu0 0.0
    %160 = vmatpush1.msra.mxu0 %v139
    %161 = vmatprep.subr.mxu0 0.0
    %162 = vmatpush1.msra.mxu0 %v140
    %163 = vmatprep.subr.mxu0 0.0
    %164 = vmatpush1.msra.mxu0 %v141
    %165 = vmatprep.subr.mxu0 0.0
    %166 = vmatpush1.msra.mxu0 %v142
    %167 = vmatprep.subr.mxu0 0.0
    %168 = vmatpush1.msra.mxu0 %v143
    %169 = vmatprep.subr.mxu0 0.0
    %170 = vmatpush1.msra.mxu0 %v144
    %171 = vmatprep.subr.mxu0 0.0
    %172 = vmatpush1.msra.mxu0 %v145
    %173 = vmatprep.subr.mxu0 0.0
    %174 = vmatpush1.msra.mxu0 0.0
    %175 = vmatprep.subr.mxu0 0.0
    %176 = vmatpush1.msra.mxu0 0.0
    %177 = vmatprep.subr.mxu0 0.0
    %178 = vmatpush1.msra.mxu0 0.0
    %179 = vmatprep.subr.mxu0 0.0
    %180 = vmatpush1.msra.mxu0 0.0
    %181 = vmatprep.subr.mxu0 0.0
    %182 = vmatpush1.msra.mxu0 0.0
    %183 = vmatprep.subr.mxu0 0.0
    %184 = vmatpush1.msra.mxu0 0.0
    %185 = vmatprep.subr.mxu0 0.0
    %186 = vmatpush1.msra.mxu0 0.0
    %187 = vmatprep.subr.mxu0 0.0
    %188 = vmatpush1.msra.mxu0 0.0
    %189 = vmatprep.subr.mxu0 0.0
    %190 = vmatpush1.msra.mxu0 0.0
    %191 = vmatprep.subr.mxu0 0.0
    %192 = vmatpush1.msra.mxu0 0.0
    %193 = vmatprep.subr.mxu0 0.0
    %194 = vmatpush1.msra.mxu0 0.0
    %195 = vmatprep.subr.mxu0 0.0
    %196 = vmatpush1.msra.mxu0 0.0
    %197 = vmatprep.subr.mxu0 0.0
    %198 = vmatpush1.msra.mxu0 0.0
    %199 = vmatprep.subr.mxu0 0.0
    %200 = vmatpush1.msra.mxu0 0.0
    %201 = vmatprep.subr.mxu0 0.0
    %202 = vmatpush1.msra.mxu0 0.0
    %203 = vmatprep.subr.mxu0 0.0
    %204 = vmatpush1.msra.mxu0 0.0
    %205 = vmatprep.subr.mxu0 0.0
    %206 = vmatpush1.msra.mxu0 0.0
    %207 = vmatprep.subr.mxu0 0.0
    %208 = vmatpush1.msra.mxu0 0.0
    %209 = vmatprep.subr.mxu0 0.0
    %210 = vmatpush1.msra.mxu0 0.0
    %211 = vmatprep.subr.mxu0 0.0
    %212 = vmatpush1.msra.mxu0 0.0
    %213 = vmatprep.subr.mxu0 0.0
    %214 = vmatpush1.msra.mxu0 0.0
    %215 = vmatprep.subr.mxu0 0.0
    %216 = vmatpush1.msra.mxu0 0.0
    %217 = vmatprep.subr.mxu0 0.0
    %218 = vmatpush1.msra.mxu0 0.0
    %219 = vmatprep.subr.mxu0 0.0
    %220 = vmatpush1.msra.mxu0 0.0
    %221 = vmatprep.mubr.f32.mxu0 0.0
    %222 = vmatmul.mubr.f32.gmra.mrb[0].mxu0 %v155
    %v223 = vpop.f32.mrb[0].mxu0
    %v224 = vadd.f32 %v151, %v223
    %v225 = vpop.f32.mrb[0].mxu0
    %226 = vdwg.mxu0
    %v227 = vmax.f32 %v224, 0.0
    %v228 = vld [vmem:[%s5] sm:$0xff]
    %v229 = vld [vmem:[%s5 + $0x8] sm:$0xff]
    %v230 = vld [vmem:[%s5 + $0x10] sm:$0xff]
    %v231 = vld [vmem:[%s5 + $0x18] sm:$0xff]
    %v232 = vld [vmem:[%s5 + $0x20] sm:$0xff]
    %v233 = vld [vmem:[%s5 + $0x28] sm:$0xff]
    %v234 = vld [vmem:[%s5 + $0x30] sm:$0xff]
    %v235 = vld [vmem:[%s5 + $0x38] sm:$0xff]
    %v236 = vld [vmem:[#allocation5] sm:$0x1]
    %v238 = vlaneseq
    %v239 = vshrl.u32 %v238, 7
    %v240 = vsub.s32 0, %v239
    %v241 = vrot.slane %v236, %v240
    %v244 = vsel %vm153, %v227, 0
    %246 = vmatprep.subr.mxu0 0.0
    %247 = vmatpush1.msra.mxu0 %v228
    %248 = vmatprep.subr.mxu0 0.0
    %249 = vmatpush1.msra.mxu0 %v229
    %250 = vmatprep.subr.mxu0 0.0
    %251 = vmatpush1.msra.mxu0 %v230
    %252 = vmatprep.subr.mxu0 0.0
    %253 = vmatpush1.msra.mxu0 %v231
    %254 = vmatprep.subr.mxu0 0.0
    %255 = vmatpush1.msra.mxu0 %v232
    %256 = vmatprep.subr.mxu0 0.0
    %257 = vmatpush1.msra.mxu0 %v233
    %258 = vmatprep.subr.mxu0 0.0
    %259 = vmatpush1.msra.mxu0 %v234
    %260 = vmatprep.subr.mxu0 0.0
    %261 = vmatpush1.msra.mxu0 %v235
    %262 = vmatprep.subr.mxu0 0.0
    %263 = vmatpush1.msra.mxu0 0.0
    %264 = vmatprep.subr.mxu0 0.0
    %265 = vmatpush1.msra.mxu0 0.0
    %266 = vmatprep.subr.mxu0 0.0
    %267 = vmatpush1.msra.mxu0 0.0
    %268 = vmatprep.subr.mxu0 0.0
    %269 = vmatpush1.msra.mxu0 0.0
    %270 = vmatprep.subr.mxu0 0.0
    %271 = vmatpush1.msra.mxu0 0.0
    %272 = vmatprep.subr.mxu0 0.0
    %273 = vmatpush1.msra.mxu0 0.0
    %274 = vmatprep.subr.mxu0 0.0
    %275 = vmatpush1.msra.mxu0 0.0
    %276 = vmatprep.subr.mxu0 0.0
    %277 = vmatpush1.msra.mxu0 0.0
    %278 = vmatprep.subr.mxu0 0.0
    %279 = vmatpush1.msra.mxu0 0.0
    %280 = vmatprep.subr.mxu0 0.0
    %281 = vmatpush1.msra.mxu0 0.0
    %282 = vmatprep.subr.mxu0 0.0
    %283 = vmatpush1.msra.mxu0 0.0
    %284 = vmatprep.subr.mxu0 0.0
    %285 = vmatpush1.msra.mxu0 0.0
    %286 = vmatprep.subr.mxu0 0.0
    %287 = vmatpush1.msra.mxu0 0.0
    %288 = vmatprep.subr.mxu0 0.0
    %289 = vmatpush1.msra.mxu0 0.0
    %290 = vmatprep.subr.mxu0 0.0
    %291 = vmatpush1.msra.mxu0 0.0
    %292 = vmatprep.subr.mxu0 0.0
    %293 = vmatpush1.msra.mxu0 0.0
    %294 = vmatprep.subr.mxu0 0.0
    %295 = vmatpush1.msra.mxu0 0.0
    %296 = vmatprep.subr.mxu0 0.0
    %297 = vmatpush1.msra.mxu0 0.0
    %298 = vmatprep.subr.mxu0 0.0
    %299 = vmatpush1.msra.mxu0 0.0
    %300 = vmatprep.subr.mxu0 0.0
    %301 = vmatpush1.msra.mxu0 0.0
    %302 = vmatprep.subr.mxu0 0.0
    %303 = vmatpush1.msra.mxu0 0.0
    %304 = vmatprep.subr.mxu0 0.0
    %305 = vmatpush1.msra.mxu0 0.0
    %306 = vmatprep.subr.mxu0 0.0
    %307 = vmatpush1.msra.mxu0 0.0
    %308 = vmatprep.subr.mxu0 0.0
    %309 = vmatpush1.msra.mxu0 0.0
    %310 = vmatprep.mubr.f32.mxu0 0.0
    %311 = vmatmul.mubr.f32.gmra.mrb[0].mxu0 %v244
    %v312 = vpop.f32.mrb[0].mxu0
    %v313 = vadd.f32 %v241, %v312
    %v314 = vpop.f32.mrb[0].mxu0
    %315 = vdwg.mxu0
    %vm316 = vcmask 130048
    %317 = vst.msk [vmem:[#allocation7] sm:$0xff] %vm316, %v313
    // Predicated region
    $region38: #{activation_net_forward.1} parent=1 // pred_check
      _
    $region39: #{activation_net_forward.1} parent=1 // pred_check_branch
      %319 = sbr.rel (0) target = $region41
    $region40: #{activation_net_forward.1} parent=1 // pred_region
      %s321 = ssub.s32 128, 128
      %322 = vsyncadd [#allocation4], %s321
      %s324 = sshll.u32 [#allocation7], 4
      %s325 = int_to_ptr.vmem [resolvable:$true] %s324
      %327 = dma.vmem_to_hbm [thread:$0]  %s325, 128, %s7, [#allocation4]
    $region41: #{activation_net_forward.1} parent=1 // pred_fallthru
      _
    // Predicated region
    $region42: #{activation_net_forward.1} parent=1 // pred_check
      _
    $region43: #{activation_net_forward.1} parent=1 // pred_check_branch
      %329 = sbr.rel (0) target = $region45
    $region44: #{activation_net_forward.1} parent=1 // pred_region
      %330 = dma.done [#allocation4], 128
    $region45: #{activation_net_forward.1} parent=1 // pred_fallthru
      _
    %331 = vsyncpa [#allocation3], 1
    %332 = vsyncpa [#allocation6], 1
    %333 = vsyncpa [#allocation4], 1

</llo_original>
